<compile_context>
chip_gen: v7x
topology: tpu7x:2x2x1
jax: 0.10.0
libtpu: 0.0.40
codegen_flags: <defaults>
</compile_context>

<pallas_src>
import jax
import jax.numpy as jnp
from jax import lax
from jax.experimental import pallas as pl
from jax.experimental.pallas import tpu as pltpu


# Contract lhs dim 1 against rhs dim 1 (rhs carries batch on its leading axis;
# Mosaic inserts the narrow in-kernel transpose on the XLU, essentially free).
_DN_RHS_T = (((1,), (1,)), ((), ()))


# ----------------------------- Pallas kernel ------------------------------ #
def l_mlp_kernel(x_ref, r_ref,
                 w1_ref, b1_ref,
                 w2_ref, b2_ref,
                 wfg_ref, wr_ref, bo_ref,
                 out_ref):
    # x_ref: (TB, len_x), r_ref: (TB, L)  -- natural batch-major layout.
    # Activations keep batch on the LANE axis: (H, TB).
    h1 = jnp.tanh(
        lax.dot_general(w1_ref[...], x_ref[...], _DN_RHS_T,
                        preferred_element_type=jnp.float32)
        + b1_ref[...]                                    # (H, 1) lane-broadcast
    )                                                    # (H, TB)
    h2 = jnp.tanh(
        jnp.dot(w2_ref[...], h1, preferred_element_type=jnp.float32)
        + b2_ref[...]
    )                                                    # (H, TB)

    # Fused Linear3 + output head: VPU multiply + sublane reduce (no N=1 matmul
    # for the h2 part); the tiny r-head is a (1,L)x(TB,L)->(1,TB) contraction.
    head = jnp.sum(h2 * wfg_ref[...], axis=0, keepdims=True)          # (1, TB)
    head = head + lax.dot_general(wr_ref[...], r_ref[...], _DN_RHS_T,
                                  preferred_element_type=jnp.float32)  # (1, TB)
    out_ref[...] = (head + bo_ref[...]).astype(out_ref.dtype)  # lane-dense


# ------------------------------ wrapper ----------------------------------- #
def _round_up(v, m):
    return ((v + m - 1) // m) * m


def l_mlp_forward(x, r, params, *, tb_max=4096):
    """x: (..., len_x) flattened to (B, len_x); r: (B, len_lambda) -> (B, 1)."""
    W1, b1 = params["W1"], params["b1"]          # (H, len_x), (H,)
    W2, b2 = params["W2"], params["b2"]          # (H, H),     (H,)
    W3, b3 = params["W3"], params["b3"]          # (L+1, H),   (L+1,)
    Wo, bo = params["Wo"], params["bo"]          # (1, 2L+1),  (1,)

    H, len_x = W1.shape
    L = r.shape[1]
    L1 = L + 1

    x2d = x.reshape(-1, len_x).astype(jnp.float32)       # (B, len_x)
    r2d = r.astype(jnp.float32)                          # (B, L)
    B = x2d.shape[0]

    # ---- host-side static weight folding (Linear3 fused into the head) ----
    wo_fg = Wo[:, :L1]                                           # (1, L+1)
    wo_r = Wo[:, L1:]                                            # (1, L)
    w_head_fg = (wo_fg @ W3).reshape(H, 1)                       # (H, 1)
    b_fused = wo_fg @ b3.reshape(L1, 1) + bo.reshape(1, 1)       # (1, 1)
    b1_col = b1.reshape(H, 1)
    b2_col = b2.reshape(H, 1)

    # ---- batch tiling --------------------------------------------------- #
    # tb_max rounded down to a multiple of 128 (and clamped at 128).
    tb_max = max(128, (int(tb_max) // 128) * 128)
    # >=2 grid steps whenever the batch allows it (megacore on v7x), while
    # amortizing per-grid-step overhead with a large lane-dense tile.
    TB = min(tb_max, _round_up(pl.cdiv(B, 2), 128))
    assert TB % 128 == 0 and TB >= 128, "batch tile must be a multiple of 128"
    B_pad = pl.cdiv(B, TB) * TB
    if B_pad != B:
        # Padded rows compute tanh(bias) garbage in dead lanes; sliced off below.
        x2d = jnp.pad(x2d, ((0, B_pad - B), (0, 0)))
        r2d = jnp.pad(r2d, ((0, B_pad - B), (0, 0)))

    grid = (B_pad // TB,)

    out_row = pl.pallas_call(
        l_mlp_kernel,
        out_shape=jax.ShapeDtypeStruct((1, B_pad), jnp.float32),
        grid=grid,
        in_specs=[
            pl.BlockSpec((TB, len_x), lambda i: (i, 0)),   # x: tiled over batch
            pl.BlockSpec((TB, L), lambda i: (i, 0)),       # r: tiled over batch
            pl.BlockSpec((H, len_x), lambda i: (0, 0)),    # W1 (VMEM-resident)
            pl.BlockSpec((H, 1), lambda i: (0, 0)),        # b1
            pl.BlockSpec((H, H), lambda i: (0, 0)),        # W2
            pl.BlockSpec((H, 1), lambda i: (0, 0)),        # b2
            pl.BlockSpec((H, 1), lambda i: (0, 0)),        # fused head weight (fg)
            pl.BlockSpec((1, L), lambda i: (0, 0)),        # head weight (r)
            pl.BlockSpec((1, 1), lambda i: (0, 0)),        # fused bias
        ],
        out_specs=pl.BlockSpec((1, TB), lambda i: (0, i)), # lane-dense output
        compiler_params=pltpu.CompilerParams(
            dimension_semantics=("parallel",),
            vmem_limit_bytes=32 * 1024 * 1024),
    )(x2d, r2d, W1, b1_col, W2, b2_col, w_head_fg, wo_r, b_fused)

    return out_row[0, :B].reshape(B, 1)


# --------------------------- parameter init ------------------------------- #
def xavier_uniform(key, out_f, in_f):
    # matches nn.init.xavier_uniform_ (gain=1); PyTorch layout (out, in)
    bound = (6.0 / (in_f + out_f)) ** 0.5
    return jax.random.uniform(key, (out_f, in_f), jnp.float32, -bound, bound)


def linear_bias(key, in_f, out_f):
    # PyTorch default Linear bias init: U(-1/sqrt(fan_in), 1/sqrt(fan_in)); 1-D
    bound = 1.0 / (in_f ** 0.5)
    return jax.random.uniform(key, (out_f,), jnp.float32, -bound, bound)


def make_params(key, len_x, len_lambda, hidden):
    ks = jax.random.split(key, 8)
    L1 = len_lambda + 1
    return {
        "W1": xavier_uniform(ks[0], hidden, len_x),
        "b1": linear_bias(ks[1], len_x, hidden),
        "W2": xavier_uniform(ks[2], hidden, hidden),
        "b2": linear_bias(ks[3], hidden, hidden),
        "W3": xavier_uniform(ks[4], L1, hidden),
        "b3": linear_bias(ks[5], hidden, L1),
        "Wo": xavier_uniform(ks[6], 1, 2 * len_lambda + 1),
        "bo": linear_bias(ks[7], 2 * len_lambda + 1, 1),
    }


# ----------------------- pure-JAX reference (unfused) ---------------------- #
def l_mlp_ref(x, r, p):
    x2d = x.reshape(-1, p["W1"].shape[1])
    h1 = jnp.tanh(x2d @ p["W1"].T + p["b1"])
    h2 = jnp.tanh(h1 @ p["W2"].T + p["b2"])
    fg = h2 @ p["W3"].T + p["b3"]
    temp = jnp.concatenate([fg, r], axis=1)
    return temp @ p["Wo"].T + p["bo"]


# ------------------------------- main -------------------------------------- #
if __name__ == "__main__":
    len_x, len_lambda, hidden, batch = 16, 4, 32, 8

    key = jax.random.PRNGKey(0)
    kx, kr, kp = jax.random.split(key, 3)

    x = jax.random.normal(kx, (batch, len_x), jnp.float32)
    r = jax.random.normal(kr, (batch, len_lambda), jnp.float32)
    params = make_params(kp, len_x, len_lambda, hidden)

    fwd = jax.jit(l_mlp_forward)       # amortize launch overhead across calls
    out = fwd(x, r, params)
    jax.block_until_ready(out)

    ref = l_mlp_ref(x, r, params)
    assert out.shape == (batch, 1)
    assert jnp.allclose(out, ref, atol=1e-5, rtol=1e-5)

    print("KERNEL_OK")
</pallas_src>

<mosaic_0001>
module attributes {stable_mosaic.version = 11 : i64} {
  func.func @l_mlp_kernel(%arg0: i32, %arg1: memref<128x16xf32, #tpu.memory_space<vmem>>, %arg2: memref<128x4xf32, #tpu.memory_space<vmem>>, %arg3: memref<32x16xf32, #tpu.memory_space<vmem>>, %arg4: memref<32x1xf32, #tpu.memory_space<vmem>>, %arg5: memref<32x32xf32, #tpu.memory_space<vmem>>, %arg6: memref<32x1xf32, #tpu.memory_space<vmem>>, %arg7: memref<32x1xf32, #tpu.memory_space<vmem>>, %arg8: memref<1x4xf32, #tpu.memory_space<vmem>>, %arg9: memref<1x1xf32, #tpu.memory_space<vmem>>, %arg10: memref<1x128xf32, #tpu.memory_space<vmem>>) attributes {dimension_semantics = [#tpu.dimension_semantics<parallel>], iteration_bounds = array<i64: 1>, scalar_prefetch = 0 : i64, scratch_operands = 0 : i64, tpu.core_type = #tpu.core_type<tc>, window_params = [{transform_indices = @transform_0, window_bounds = array<i64: 128, 16>}, {transform_indices = @transform_1, window_bounds = array<i64: 128, 4>}, {pipeline_mode = #tpu.pipeline_mode<synchronous>, transform_indices = @transform_2, window_bounds = array<i64: 32, 16>}, {pipeline_mode = #tpu.pipeline_mode<synchronous>, transform_indices = @transform_3, window_bounds = array<i64: 32, 1>}, {pipeline_mode = #tpu.pipeline_mode<synchronous>, transform_indices = @transform_4, window_bounds = array<i64: 32, 32>}, {pipeline_mode = #tpu.pipeline_mode<synchronous>, transform_indices = @transform_5, window_bounds = array<i64: 32, 1>}, {pipeline_mode = #tpu.pipeline_mode<synchronous>, transform_indices = @transform_6, window_bounds = array<i64: 32, 1>}, {pipeline_mode = #tpu.pipeline_mode<synchronous>, transform_indices = @transform_7, window_bounds = array<i64: 1, 4>}, {pipeline_mode = #tpu.pipeline_mode<synchronous>, transform_indices = @transform_8, window_bounds = array<i64: 1, 1>}, {transform_indices = @transform_9, window_bounds = array<i64: 1, 128>}]} {
    %c0 = arith.constant 0 : index
    %c0_0 = arith.constant 0 : index
    %0 = vector.load %arg3[%c0, %c0_0] : memref<32x16xf32, #tpu.memory_space<vmem>>, vector<32x16xf32>
    %c0_1 = arith.constant 0 : index
    %c0_2 = arith.constant 0 : index
    %1 = vector.load %arg1[%c0_1, %c0_2] : memref<128x16xf32, #tpu.memory_space<vmem>>, vector<128x16xf32>
    %cst = arith.constant dense<0.000000e+00> : vector<32x128xf32>
    %2 = tpu.matmul %0, %1, %cst {dimension_numbers = #tpu.dot_dimension_numbers<[1], [1], [0], [0], [0, 0, 1, 0], [], []>} : vector<32x16xf32>, vector<128x16xf32>, vector<32x128xf32> -> vector<32x128xf32>
    %c0_3 = arith.constant 0 : index
    %c0_4 = arith.constant 0 : index
    %3 = vector.load %arg4[%c0_3, %c0_4] : memref<32x1xf32, #tpu.memory_space<vmem>>, vector<32x1xf32>
    %4 = vector.broadcast %3 : vector<32x1xf32> to vector<32x128xf32>
    %5 = arith.addf %2, %4 : vector<32x128xf32>
    %6 = math.tanh %5 : vector<32x128xf32>
    %c0_5 = arith.constant 0 : index
    %c0_6 = arith.constant 0 : index
    %7 = vector.load %arg5[%c0_5, %c0_6] : memref<32x32xf32, #tpu.memory_space<vmem>>, vector<32x32xf32>
    %cst_7 = arith.constant dense<0.000000e+00> : vector<32x128xf32>
    %8 = tpu.matmul %7, %6, %cst_7 {dimension_numbers = #tpu.dot_dimension_numbers<[1], [0], [0], [1], [0, 0, 1, 1], [], []>} : vector<32x32xf32>, vector<32x128xf32>, vector<32x128xf32> -> vector<32x128xf32>
    %c0_8 = arith.constant 0 : index
    %c0_9 = arith.constant 0 : index
    %9 = vector.load %arg6[%c0_8, %c0_9] : memref<32x1xf32, #tpu.memory_space<vmem>>, vector<32x1xf32>
    %10 = vector.broadcast %9 : vector<32x1xf32> to vector<32x128xf32>
    %11 = arith.addf %8, %10 : vector<32x128xf32>
    %12 = math.tanh %11 : vector<32x128xf32>
    %c0_10 = arith.constant 0 : index
    %c0_11 = arith.constant 0 : index
    %13 = vector.load %arg7[%c0_10, %c0_11] : memref<32x1xf32, #tpu.memory_space<vmem>>, vector<32x1xf32>
    %14 = vector.broadcast %13 : vector<32x1xf32> to vector<32x128xf32>
    %15 = arith.mulf %12, %14 : vector<32x128xf32>
    %cst_12 = arith.constant dense<0.000000e+00> : vector<128xf32>
    %16 = vector.multi_reduction <add>, %15, %cst_12 [0] : vector<32x128xf32> to vector<128xf32>
    %17 = vector.shape_cast %16 : vector<128xf32> to vector<1x128xf32>
    %c0_13 = arith.constant 0 : index
    %c0_14 = arith.constant 0 : index
    %18 = vector.load %arg8[%c0_13, %c0_14] : memref<1x4xf32, #tpu.memory_space<vmem>>, vector<1x4xf32>
    %c0_15 = arith.constant 0 : index
    %c0_16 = arith.constant 0 : index
    %19 = vector.load %arg2[%c0_15, %c0_16] : memref<128x4xf32, #tpu.memory_space<vmem>>, vector<128x4xf32>
    %cst_17 = arith.constant dense<0.000000e+00> : vector<1x128xf32>
    %20 = tpu.matmul %18, %19, %cst_17 {dimension_numbers = #tpu.dot_dimension_numbers<[1], [1], [0], [0], [0, 0, 1, 0], [], []>} : vector<1x4xf32>, vector<128x4xf32>, vector<1x128xf32> -> vector<1x128xf32>
    %21 = arith.addf %17, %20 : vector<1x128xf32>
    %c0_18 = arith.constant 0 : index
    %c0_19 = arith.constant 0 : index
    %22 = vector.load %arg9[%c0_18, %c0_19] : memref<1x1xf32, #tpu.memory_space<vmem>>, vector<1x1xf32>
    %23 = vector.broadcast %22 : vector<1x1xf32> to vector<1x128xf32>
    %24 = arith.addf %21, %23 : vector<1x128xf32>
    %c0_20 = arith.constant 0 : index
    %c0_21 = arith.constant 0 : index
    %25 = vector.load %arg10[%c0_20, %c0_21] : memref<1x128xf32, #tpu.memory_space<vmem>>, vector<1x128xf32>
    tpu.vector_store %arg10[%c0_20, %c0_21], %24 {strides = array<i32>} : memref<1x128xf32, #tpu.memory_space<vmem>>, vector<1x128xf32>,
    return
  }
  func.func @transform_0(%arg0: i32) -> (i32, i32) {
    %c0_i32 = arith.constant 0 : i32
    %c0_i32_0 = arith.constant 0 : i32
    return %arg0, %c0_i32 : i32, i32
  }
  func.func @transform_1(%arg0: i32) -> (i32, i32) {
    %c0_i32 = arith.constant 0 : i32
    %c0_i32_0 = arith.constant 0 : i32
    return %arg0, %c0_i32 : i32, i32
  }
  func.func @transform_2(%arg0: i32) -> (i32, i32) {
    %c0_i32 = arith.constant 0 : i32
    %c0_i32_0 = arith.constant 0 : i32
    %c0_i32_1 = arith.constant 0 : i32
    return %c0_i32, %c0_i32_0 : i32, i32
  }
  func.func @transform_3(%arg0: i32) -> (i32, i32) {
    %c0_i32 = arith.constant 0 : i32
    %c0_i32_0 = arith.constant 0 : i32
    %c0_i32_1 = arith.constant 0 : i32
    return %c0_i32, %c0_i32_0 : i32, i32
  }
  func.func @transform_4(%arg0: i32) -> (i32, i32) {
    %c0_i32 = arith.constant 0 : i32
    %c0_i32_0 = arith.constant 0 : i32
    %c0_i32_1 = arith.constant 0 : i32
    return %c0_i32, %c0_i32_0 : i32, i32
  }
  func.func @transform_5(%arg0: i32) -> (i32, i32) {
    %c0_i32 = arith.constant 0 : i32
    %c0_i32_0 = arith.constant 0 : i32
    %c0_i32_1 = arith.constant 0 : i32
    return %c0_i32, %c0_i32_0 : i32, i32
  }
  func.func @transform_6(%arg0: i32) -> (i32, i32) {
    %c0_i32 = arith.constant 0 : i32
    %c0_i32_0 = arith.constant 0 : i32
    %c0_i32_1 = arith.constant 0 : i32
    return %c0_i32, %c0_i32_0 : i32, i32
  }
  func.func @transform_7(%arg0: i32) -> (i32, i32) {
    %c0_i32 = arith.constant 0 : i32
    %c0_i32_0 = arith.constant 0 : i32
    %c0_i32_1 = arith.constant 0 : i32
    return %c0_i32, %c0_i32_0 : i32, i32
  }
  func.func @transform_8(%arg0: i32) -> (i32, i32) {
    %c0_i32 = arith.constant 0 : i32
    %c0_i32_0 = arith.constant 0 : i32
    %c0_i32_1 = arith.constant 0 : i32
    return %c0_i32, %c0_i32_0 : i32, i32
  }
  func.func @transform_9(%arg0: i32) -> (i32, i32) {
    %c0_i32 = arith.constant 0 : i32
    %c0_i32_0 = arith.constant 0 : i32
    return %c0_i32, %arg0 : i32, i32
  }
}

</mosaic_0001>

<llo_original>
// kernel: l_mlp_forward.1
$region0: #{l_mlp_forward.1}
  #allocation0 [shape = 'u32[]', space=smem, size = 0x4, offset = 0x4, fixed_abs, tag = 'smem constant byte address 0x4 - core index']
  #allocation1 [shape = 'u32[144,128]{1,0:T(1,128)}', space=vmem, size = 0x12000, scoped, tag = 'internal scratch']
  #allocation2 [shape = 'f32[1,1]{1,0:T(1,128)S(1)}', space=vmem, size = 0x200, scoped, tag = 'scoped memory for l_mlp_forward.1']
  %s0 = inlined_call_operand.vmem [shape: f32[128,16], index: 0, kind: input, shape index: {}]
  %s1 = inlined_call_operand.vmem [shape: f32[128,4], index: 1, kind: input, shape index: {}]
  %s2 = inlined_call_operand.vmem [shape: f32[32,16], index: 2, kind: input, shape index: {}]
  %s3 = inlined_call_operand.vmem [shape: f32[32,1], index: 3, kind: input, shape index: {}]
  %s4 = inlined_call_operand.vmem [shape: f32[32,32], index: 4, kind: input, shape index: {}]
  %s5 = inlined_call_operand.vmem [shape: f32[32,1], index: 5, kind: input, shape index: {}]
  %s6 = inlined_call_operand.vmem [shape: f32[32,1], index: 6, kind: input, shape index: {}]
  %s7 = inlined_call_operand.vmem [shape: f32[1,4], index: 7, kind: input, shape index: {}]
  %s8 = inlined_call_operand.<no memory space> [shape: f32[1,1], index: 8, kind: input, shape index: {}]
  %s9 = inlined_call_operand.vmem [shape: f32[1,128], index: 9, kind: output, shape index: {}]
  %s10 = sld [smem:[#allocation0]]
  $region46: #{l_mlp_forward.1} parent=0
    _
  %s12 = ssub.s32 1, %s10
  %s13 = scalar_select 0, %s12, %s10
  %v14 = vstv %s8
  %15 = vst [vmem:[#allocation2] sm:$0x1] %v14
  // Predicated region
  $region2: #{l_mlp_forward.1} parent=0 // pred_check
    _
  $region3: #{l_mlp_forward.1} parent=0 // pred_check_branch
    %17 = sbr.rel (0) target = $region5
  $region4: #{l_mlp_forward.1} parent=0 // pred_region
    _
  $region5: #{l_mlp_forward.1} parent=0 // pred_fallthru
    _
  // Predicated region
  $region6: #{l_mlp_forward.1} parent=0 // pred_check
    _
  $region7: #{l_mlp_forward.1} parent=0 // pred_check_branch
    %19 = sbr.rel (0) target = $region9
  $region8: #{l_mlp_forward.1} parent=0 // pred_region
    _
  $region9: #{l_mlp_forward.1} parent=0 // pred_fallthru
    _
  // Predicated region
  $region10: #{l_mlp_forward.1} parent=0 // pred_check
    _
  $region11: #{l_mlp_forward.1} parent=0 // pred_check_branch
    %21 = sbr.rel (0) target = $region13
  $region12: #{l_mlp_forward.1} parent=0 // pred_region
    _
  $region13: #{l_mlp_forward.1} parent=0 // pred_fallthru
    _
  // Predicated region
  $region14: #{l_mlp_forward.1} parent=0 // pred_check
    _
  $region15: #{l_mlp_forward.1} parent=0 // pred_check_branch
    %23 = sbr.rel (0) target = $region17
  $region16: #{l_mlp_forward.1} parent=0 // pred_region
    _
  $region17: #{l_mlp_forward.1} parent=0 // pred_fallthru
    _
  // Predicated region
  $region18: #{l_mlp_forward.1} parent=0 // pred_check
    _
  $region19: #{l_mlp_forward.1} parent=0 // pred_check_branch
    %25 = sbr.rel (0) target = $region21
  $region20: #{l_mlp_forward.1} parent=0 // pred_region
    _
  $region21: #{l_mlp_forward.1} parent=0 // pred_fallthru
    _
  // Predicated region
  $region22: #{l_mlp_forward.1} parent=0 // pred_check
    _
  $region23: #{l_mlp_forward.1} parent=0 // pred_check_branch
    %27 = sbr.rel (0) target = $region25
  $region24: #{l_mlp_forward.1} parent=0 // pred_region
    _
  $region25: #{l_mlp_forward.1} parent=0 // pred_fallthru
    _
  // Predicated region
  $region26: #{l_mlp_forward.1} parent=0 // pred_check
    _
  $region27: #{l_mlp_forward.1} parent=0 // pred_check_branch
    %29 = sbr.rel (0) target = $region29
  $region28: #{l_mlp_forward.1} parent=0 // pred_region
    _
  $region29: #{l_mlp_forward.1} parent=0 // pred_fallthru
    _
  // Predicated region
  $region30: #{l_mlp_forward.1} parent=0 // pred_check
    _
  $region31: #{l_mlp_forward.1} parent=0 // pred_check_branch
    %31 = sbr.rel (0) target = $region33
  $region32: #{l_mlp_forward.1} parent=0 // pred_region
    _
  $region33: #{l_mlp_forward.1} parent=0 // pred_fallthru
    _
  // Predicated region
  $region34: #{l_mlp_forward.1} parent=0 // pred_check
    _
  $region35: #{l_mlp_forward.1} parent=0 // pred_check_branch
    %33 = sbr.rel (0) target = $region37
  $region36: #{l_mlp_forward.1} parent=0 // pred_region
    _
  $region37: #{l_mlp_forward.1} parent=0 // pred_fallthru
    _
  %v34 = vld [vmem:[%s2] sm:$0xff]
  %v35 = vld [vmem:[%s2 + $0x8] sm:$0xff]
  %v36 = vld [vmem:[%s2 + $0x10] sm:$0xff]
  %v37 = vld [vmem:[%s2 + $0x18] sm:$0xff]
  %v38 = vld [vmem:[%s0] sm:$0xff]
  %v39 = vld [vmem:[%s0 + $0x8] sm:$0xff]
  %v40 = vld [vmem:[%s0 + $0x10] sm:$0xff]
  %v41 = vld [vmem:[%s0 + $0x18] sm:$0xff]
  %v42 = vld [vmem:[%s0 + $0x20] sm:$0xff]
  %v43 = vld [vmem:[%s0 + $0x28] sm:$0xff]
  %v44 = vld [vmem:[%s0 + $0x30] sm:$0xff]
  %v45 = vld [vmem:[%s0 + $0x38] sm:$0xff]
  %v46 = vld [vmem:[%s0 + $0x40] sm:$0xff]
  %v47 = vld [vmem:[%s0 + $0x48] sm:$0xff]
  %v48 = vld [vmem:[%s0 + $0x50] sm:$0xff]
  %v49 = vld [vmem:[%s0 + $0x58] sm:$0xff]
  %v50 = vld [vmem:[%s0 + $0x60] sm:$0xff]
  %v51 = vld [vmem:[%s0 + $0x68] sm:$0xff]
  %v52 = vld [vmem:[%s0 + $0x70] sm:$0xff]
  %v53 = vld [vmem:[%s0 + $0x78] sm:$0xff]
  %v54 = vld [vmem:[%s3] sm:$0xff]
  %v55 = vld [vmem:[%s3 + $0x8] sm:$0xff]
  %v56 = vld [vmem:[%s3 + $0x10] sm:$0xff]
  %v57 = vld [vmem:[%s3 + $0x18] sm:$0xff]
  %59 = vset.pattern.permute.xlu0 0
  %60 = vperm.xlu0 %59, %v54
  %v61 = vpop.permute.xlu0 %60
  %64 = vset.pattern.permute.xlu0 0
  %65 = vperm.xlu0 %64, %v55
  %v66 = vpop.permute.xlu0 %65
  %69 = vset.pattern.permute.xlu0 0
  %70 = vperm.xlu0 %69, %v56
  %v71 = vpop.permute.xlu0 %70
  %74 = vset.pattern.permute.xlu0 0
  %75 = vperm.xlu0 %74, %v57
  %v76 = vpop.permute.xlu0 %75
  %vm78 = vcmask 130048
  %v80 = vsel %vm78, %v34, 0
  %v83 = vsel %vm78, %v35, 0
  %v86 = vsel %vm78, %v36, 0
  %v89 = vsel %vm78, %v37, 0
  %v92 = vsel %vm78, %v38, 0
  %v95 = vsel %vm78, %v39, 0
  %v98 = vsel %vm78, %v40, 0
  %v101 = vsel %vm78, %v41, 0
  %v104 = vsel %vm78, %v42, 0
  %v107 = vsel %vm78, %v43, 0
  %v110 = vsel %vm78, %v44, 0
  %v113 = vsel %vm78, %v45, 0
  %v116 = vsel %vm78, %v46, 0
  %v119 = vsel %vm78, %v47, 0
  %v122 = vsel %vm78, %v48, 0
  %v125 = vsel %vm78, %v49, 0
  %v128 = vsel %vm78, %v50, 0
  %v131 = vsel %vm78, %v51, 0
  %v134 = vsel %vm78, %v52, 0
  %v137 = vsel %vm78, %v53, 0
  %139 = vmatprep.subr.mxu0 0.0
  %140 = vmatpush1.xpose.msra.mxu0 %v92
  %141 = vmatprep.subr.mxu0 0.0
  %142 = vmatpush1.xpose.msra.mxu0 %v95
  %143 = vmatprep.subr.mxu0 0.0
  %144 = vmatpush1.xpose.msra.mxu0 %v98
  %145 = vmatprep.subr.mxu0 0.0
  %146 = vmatpush1.xpose.msra.mxu0 %v101
  %147 = vmatprep.subr.mxu0 0.0
  %148 = vmatpush1.xpose.msra.mxu0 %v104
  %149 = vmatprep.subr.mxu0 0.0
  %150 = vmatpush1.xpose.msra.mxu0 %v107
  %151 = vmatprep.subr.mxu0 0.0
  %152 = vmatpush1.xpose.msra.mxu0 %v110
  %153 = vmatprep.subr.mxu0 0.0
  %154 = vmatpush1.xpose.msra.mxu0 %v113
  %155 = vmatprep.subr.mxu0 0.0
  %156 = vmatpush1.xpose.msra.mxu0 %v116
  %157 = vmatprep.subr.mxu0 0.0
  %158 = vmatpush1.xpose.msra.mxu0 %v119
  %159 = vmatprep.subr.mxu0 0.0
  %160 = vmatpush1.xpose.msra.mxu0 %v122
  %161 = vmatprep.subr.mxu0 0.0
  %162 = vmatpush1.xpose.msra.mxu0 %v125
  %163 = vmatprep.subr.mxu0 0.0
  %164 = vmatpush1.xpose.msra.mxu0 %v128
  %165 = vmatprep.subr.mxu0 0.0
  %166 = vmatpush1.xpose.msra.mxu0 %v131
  %167 = vmatprep.subr.mxu0 0.0
  %168 = vmatpush1.xpose.msra.mxu0 %v134
  %169 = vmatprep.subr.mxu0 0.0
  %170 = vmatpush1.xpose.msra.mxu0 %v137
  %171 = vmatprep.subr.mxu0 0.0
  %172 = vmatpush1.xpose.msra.mxu0 0.0
  %173 = vmatprep.subr.mxu0 0.0
  %174 = vmatpush1.xpose.msra.mxu0 0.0
  %175 = vmatprep.subr.mxu0 0.0
  %176 = vmatpush1.xpose.msra.mxu0 0.0
  %177 = vmatprep.subr.mxu0 0.0
  %178 = vmatpush1.xpose.msra.mxu0 0.0
  %179 = vmatprep.subr.mxu0 0.0
  %180 = vmatpush1.xpose.msra.mxu0 0.0
  %181 = vmatprep.subr.mxu0 0.0
  %182 = vmatpush1.xpose.msra.mxu0 0.0
  %183 = vmatprep.subr.mxu0 0.0
  %184 = vmatpush1.xpose.msra.mxu0 0.0
  %185 = vmatprep.subr.mxu0 0.0
  %186 = vmatpush1.xpose.msra.mxu0 0.0
  %187 = vmatprep.subr.mxu0 0.0
  %188 = vmatpush1.xpose.msra.mxu0 0.0
  %189 = vmatprep.subr.mxu0 0.0
  %190 = vmatpush1.xpose.msra.mxu0 0.0
  %191 = vmatprep.subr.mxu0 0.0
  %192 = vmatpush1.xpose.msra.mxu0 0.0
  %193 = vmatprep.subr.mxu0 0.0
  %194 = vmatpush1.xpose.msra.mxu0 0.0
  %195 = vmatprep.subr.mxu0 0.0
  %196 = vmatpush1.xpose.msra.mxu0 0.0
  %197 = vmatprep.subr.mxu0 0.0
  %198 = vmatpush1.xpose.msra.mxu0 0.0
  %199 = vmatprep.subr.mxu0 0.0
  %200 = vmatpush1.xpose.msra.mxu0 0.0
  %201 = vmatprep.subr.mxu0 0.0
  %202 = vmatpush1.xpose.msra.mxu0 0.0
  %203 = vmatprep.mubr.f32.mxu0 0.0
  %204 = vmatmul.mubr.f32.gmra.mrb[0].mxu0 %v80
  %v205 = vpop.f32.mrb[0].mxu0
  %v206 = vadd.f32 %v61, %v205
  %v207 = vpop.f32.mrb[0].mxu0
  %208 = vmatprep.mubr.f32.mxu0 0.0
  %209 = vmatmul.mubr.f32.gmra.mrb[0].mxu0 %v83
  %v210 = vpop.f32.mrb[0].mxu0
  %v211 = vadd.f32 %v66, %v210
  %v212 = vpop.f32.mrb[0].mxu0
  %213 = vmatprep.mubr.f32.mxu0 0.0
  %214 = vmatmul.mubr.f32.gmra.mrb[0].mxu0 %v86
  %v215 = vpop.f32.mrb[0].mxu0
  %v216 = vadd.f32 %v71, %v215
  %v217 = vpop.f32.mrb[0].mxu0
  %218 = vmatprep.mubr.f32.mxu0 0.0
  %219 = vmatmul.mubr.f32.gmra.mrb[0].mxu0 %v89
  %v220 = vpop.f32.mrb[0].mxu0
  %v221 = vadd.f32 %v76, %v220
  %v222 = vpop.f32.mrb[0].mxu0
  %223 = vdwg.mxu0
  %v224 = vtanh.pop %v206
  %v225 = vtanh.pop %v211
  %v226 = vtanh.pop %v216
  %v227 = vtanh.pop %v221
  %v228 = vld [vmem:[%s4] sm:$0xff]
  %v229 = vld [vmem:[%s4 + $0x8] sm:$0xff]
  %v230 = vld [vmem:[%s4 + $0x10] sm:$0xff]
  %v231 = vld [vmem:[%s4 + $0x18] sm:$0xff]
  %v232 = vld [vmem:[%s5] sm:$0xff]
  %v233 = vld [vmem:[%s5 + $0x8] sm:$0xff]
  %v234 = vld [vmem:[%s5 + $0x10] sm:$0xff]
  %v235 = vld [vmem:[%s5 + $0x18] sm:$0xff]
  %237 = vset.pattern.permute.xlu0 0
  %238 = vperm.xlu0 %237, %v232
  %v239 = vpop.permute.xlu0 %238
  %242 = vset.pattern.permute.xlu0 0
  %243 = vperm.xlu0 %242, %v233
  %v244 = vpop.permute.xlu0 %243
  %247 = vset.pattern.permute.xlu0 0
  %248 = vperm.xlu0 %247, %v234
  %v249 = vpop.permute.xlu0 %248
  %252 = vset.pattern.permute.xlu0 0
  %253 = vperm.xlu0 %252, %v235
  %v254 = vpop.permute.xlu0 %253
  %vm256 = vcmask 261120
  %v258 = vsel %vm256, %v228, 0
  %v261 = vsel %vm256, %v229, 0
  %v264 = vsel %vm256, %v230, 0
  %v267 = vsel %vm256, %v231, 0
  %269 = vmatprep.subr.mxu0 0.0
  %270 = vmatpush1.msra.mxu0 %v224
  %271 = vmatprep.subr.mxu0 0.0
  %272 = vmatpush1.msra.mxu0 %v225
  %273 = vmatprep.subr.mxu0 0.0
  %274 = vmatpush1.msra.mxu0 %v226
  %275 = vmatprep.subr.mxu0 0.0
  %276 = vmatpush1.msra.mxu0 %v227
  %277 = vmatprep.subr.mxu0 0.0
  %278 = vmatpush1.msra.mxu0 0.0
  %279 = vmatprep.subr.mxu0 0.0
  %280 = vmatpush1.msra.mxu0 0.0
  %281 = vmatprep.subr.mxu0 0.0
  %282 = vmatpush1.msra.mxu0 0.0
  %283 = vmatprep.subr.mxu0 0.0
  %284 = vmatpush1.msra.mxu0 0.0
  %285 = vmatprep.subr.mxu0 0.0
  %286 = vmatpush1.msra.mxu0 0.0
  %287 = vmatprep.subr.mxu0 0.0
  %288 = vmatpush1.msra.mxu0 0.0
  %289 = vmatprep.subr.mxu0 0.0
  %290 = vmatpush1.msra.mxu0 0.0
  %291 = vmatprep.subr.mxu0 0.0
  %292 = vmatpush1.msra.mxu0 0.0
  %293 = vmatprep.subr.mxu0 0.0
  %294 = vmatpush1.msra.mxu0 0.0
  %295 = vmatprep.subr.mxu0 0.0
  %296 = vmatpush1.msra.mxu0 0.0
  %297 = vmatprep.subr.mxu0 0.0
  %298 = vmatpush1.msra.mxu0 0.0
  %299 = vmatprep.subr.mxu0 0.0
  %300 = vmatpush1.msra.mxu0 0.0
  %301 = vmatprep.subr.mxu0 0.0
  %302 = vmatpush1.msra.mxu0 0.0
  %303 = vmatprep.subr.mxu0 0.0
  %304 = vmatpush1.msra.mxu0 0.0
  %305 = vmatprep.subr.mxu0 0.0
  %306 = vmatpush1.msra.mxu0 0.0
  %307 = vmatprep.subr.mxu0 0.0
  %308 = vmatpush1.msra.mxu0 0.0
  %309 = vmatprep.subr.mxu0 0.0
  %310 = vmatpush1.msra.mxu0 0.0
  %311 = vmatprep.subr.mxu0 0.0
  %312 = vmatpush1.msra.mxu0 0.0
  %313 = vmatprep.subr.mxu0 0.0
  %314 = vmatpush1.msra.mxu0 0.0
  %315 = vmatprep.subr.mxu0 0.0
  %316 = vmatpush1.msra.mxu0 0.0
  %317 = vmatprep.subr.mxu0 0.0
  %318 = vmatpush1.msra.mxu0 0.0
  %319 = vmatprep.subr.mxu0 0.0
  %320 = vmatpush1.msra.mxu0 0.0
  %321 = vmatprep.subr.mxu0 0.0
  %322 = vmatpush1.msra.mxu0 0.0
  %323 = vmatprep.subr.mxu0 0.0
  %324 = vmatpush1.msra.mxu0 0.0
  %325 = vmatprep.subr.mxu0 0.0
  %326 = vmatpush1.msra.mxu0 0.0
  %327 = vmatprep.subr.mxu0 0.0
  %328 = vmatpush1.msra.mxu0 0.0
  %329 = vmatprep.subr.mxu0 0.0
  %330 = vmatpush1.msra.mxu0 0.0
  %331 = vmatprep.subr.mxu0 0.0
  %332 = vmatpush1.msra.mxu0 0.0
  %333 = vmatprep.mubr.f32.mxu0 0.0
  %334 = vmatmul.mubr.f32.gmra.mrb[0].mxu0 %v258
  %v335 = vpop.f32.mrb[0].mxu0
  %v336 = vadd.f32 %v239, %v335
  %v337 = vpop.f32.mrb[0].mxu0
  %338 = vmatprep.mubr.f32.mxu0 0.0
  %339 = vmatmul.mubr.f32.gmra.mrb[0].mxu0 %v261
  %v340 = vpop.f32.mrb[0].mxu0
  %v341 = vadd.f32 %v244, %v340
  %v342 = vpop.f32.mrb[0].mxu0
  %343 = vmatprep.mubr.f32.mxu0 0.0
  %344 = vmatmul.mubr.f32.gmra.mrb[0].mxu0 %v264
  %v345 = vpop.f32.mrb[0].mxu0
  %v346 = vadd.f32 %v249, %v345
  %v347 = vpop.f32.mrb[0].mxu0
  %348 = vmatprep.mubr.f32.mxu0 0.0
  %349 = vmatmul.mubr.f32.gmra.mrb[0].mxu0 %v267
  %v350 = vpop.f32.mrb[0].mxu0
  %v351 = vadd.f32 %v254, %v350
  %v352 = vpop.f32.mrb[0].mxu0
  %353 = vdwg.mxu0
  %v354 = vtanh.pop %v336
  %v355 = vtanh.pop %v341
  %v356 = vtanh.pop %v346
  %v357 = vtanh.pop %v351
  %v358 = vld [vmem:[%s6] sm:$0xff]
  %v359 = vld [vmem:[%s6 + $0x8] sm:$0xff]
  %v360 = vld [vmem:[%s6 + $0x10] sm:$0xff]
  %v361 = vld [vmem:[%s6 + $0x18] sm:$0xff]
  %363 = vset.pattern.permute.xlu0 0
  %364 = vperm.xlu0 %363, %v358
  %v365 = vpop.permute.xlu0 %364
  %368 = vset.pattern.permute.xlu0 0
  %369 = vperm.xlu0 %368, %v359
  %v370 = vpop.permute.xlu0 %369
  %373 = vset.pattern.permute.xlu0 0
  %374 = vperm.xlu0 %373, %v360
  %v375 = vpop.permute.xlu0 %374
  %378 = vset.pattern.permute.xlu0 0
  %379 = vperm.xlu0 %378, %v361
  %v380 = vpop.permute.xlu0 %379
  %v382 = vmul.f32 %v354, %v365
  %v383 = vmul.f32 %v355, %v370
  %v384 = vmul.f32 %v356, %v375
  %v385 = vmul.f32 %v357, %v380
  %v386 = vadd.f32 %v382, %v383
  %v387 = vadd.f32 %v386, %v384
  %v388 = vadd.f32 %v387, %v385
  %v389 = vrot.slane %v388, 4
  %v390 = vadd.f32 %v388, %v389
  %v391 = vrot.slane %v390, 2
  %v392 = vadd.f32 %v390, %v391
  %v393 = vrot.slane %v392, 1
  %v394 = vadd.f32 %v392, %v393
  %v395 = vld [vmem:[%s7] sm:$0x1]
  %v396 = vld [vmem:[%s1] sm:$0xff]
  %v397 = vld [vmem:[%s1 + $0x8] sm:$0xff]
  %v398 = vld [vmem:[%s1 + $0x10] sm:$0xff]
  %v399 = vld [vmem:[%s1 + $0x18] sm:$0xff]
  %v400 = vld [vmem:[%s1 + $0x20] sm:$0xff]
  %v401 = vld [vmem:[%s1 + $0x28] sm:$0xff]
  %v402 = vld [vmem:[%s1 + $0x30] sm:$0xff]
  %v403 = vld [vmem:[%s1 + $0x38] sm:$0xff]
  %v404 = vld [vmem:[%s1 + $0x40] sm:$0xff]
  %v405 = vld [vmem:[%s1 + $0x48] sm:$0xff]
  %v406 = vld [vmem:[%s1 + $0x50] sm:$0xff]
  %v407 = vld [vmem:[%s1 + $0x58] sm:$0xff]
  %v408 = vld [vmem:[%s1 + $0x60] sm:$0xff]
  %v409 = vld [vmem:[%s1 + $0x68] sm:$0xff]
  %v410 = vld [vmem:[%s1 + $0x70] sm:$0xff]
  %v411 = vld [vmem:[%s1 + $0x78] sm:$0xff]
  %vm412 = vcmask 31744
  %v414 = vsel %vm412, %v395, 0
  %v417 = vsel %vm412, %v396, 0
  %v420 = vsel %vm412, %v397, 0
  %v423 = vsel %vm412, %v398, 0
  %v426 = vsel %vm412, %v399, 0
  %v429 = vsel %vm412, %v400, 0
  %v432 = vsel %vm412, %v401, 0
  %v435 = vsel %vm412, %v402, 0
  %v438 = vsel %vm412, %v403, 0
  %v441 = vsel %vm412, %v404, 0
  %v444 = vsel %vm412, %v405, 0
  %v447 = vsel %vm412, %v406, 0
  %v450 = vsel %vm412, %v407, 0
  %v453 = vsel %vm412, %v408, 0
  %v456 = vsel %vm412, %v409, 0
  %v459 = vsel %vm412, %v410, 0
  %v462 = vsel %vm412, %v411, 0
  %464 = vmatprep.subr.mxu0 0.0
  %465 = vmatpush1.xpose.msra.mxu0 %v417
  %466 = vmatprep.subr.mxu0 0.0
  %467 = vmatpush1.xpose.msra.mxu0 %v420
  %468 = vmatprep.subr.mxu0 0.0
  %469 = vmatpush1.xpose.msra.mxu0 %v423
  %470 = vmatprep.subr.mxu0 0.0
  %471 = vmatpush1.xpose.msra.mxu0 %v426
  %472 = vmatprep.subr.mxu0 0.0
  %473 = vmatpush1.xpose.msra.mxu0 %v429
  %474 = vmatprep.subr.mxu0 0.0
  %475 = vmatpush1.xpose.msra.mxu0 %v432
  %476 = vmatprep.subr.mxu0 0.0
  %477 = vmatpush1.xpose.msra.mxu0 %v435
  %478 = vmatprep.subr.mxu0 0.0
  %479 = vmatpush1.xpose.msra.mxu0 %v438
  %480 = vmatprep.subr.mxu0 0.0
  %481 = vmatpush1.xpose.msra.mxu0 %v441
  %482 = vmatprep.subr.mxu0 0.0
  %483 = vmatpush1.xpose.msra.mxu0 %v444
  %484 = vmatprep.subr.mxu0 0.0
  %485 = vmatpush1.xpose.msra.mxu0 %v447
  %486 = vmatprep.subr.mxu0 0.0
  %487 = vmatpush1.xpose.msra.mxu0 %v450
  %488 = vmatprep.subr.mxu0 0.0
  %489 = vmatpush1.xpose.msra.mxu0 %v453
  %490 = vmatprep.subr.mxu0 0.0
  %491 = vmatpush1.xpose.msra.mxu0 %v456
  %492 = vmatprep.subr.mxu0 0.0
  %493 = vmatpush1.xpose.msra.mxu0 %v459
  %494 = vmatprep.subr.mxu0 0.0
  %495 = vmatpush1.xpose.msra.mxu0 %v462
  %496 = vmatprep.subr.mxu0 0.0
  %497 = vmatpush1.xpose.msra.mxu0 0.0
  %498 = vmatprep.subr.mxu0 0.0
  %499 = vmatpush1.xpose.msra.mxu0 0.0
  %500 = vmatprep.subr.mxu0 0.0
  %501 = vmatpush1.xpose.msra.mxu0 0.0
  %502 = vmatprep.subr.mxu0 0.0
  %503 = vmatpush1.xpose.msra.mxu0 0.0
  %504 = vmatprep.subr.mxu0 0.0
  %505 = vmatpush1.xpose.msra.mxu0 0.0
  %506 = vmatprep.subr.mxu0 0.0
  %507 = vmatpush1.xpose.msra.mxu0 0.0
  %508 = vmatprep.subr.mxu0 0.0
  %509 = vmatpush1.xpose.msra.mxu0 0.0
  %510 = vmatprep.subr.mxu0 0.0
  %511 = vmatpush1.xpose.msra.mxu0 0.0
  %512 = vmatprep.subr.mxu0 0.0
  %513 = vmatpush1.xpose.msra.mxu0 0.0
  %514 = vmatprep.subr.mxu0 0.0
  %515 = vmatpush1.xpose.msra.mxu0 0.0
  %516 = vmatprep.subr.mxu0 0.0
  %517 = vmatpush1.xpose.msra.mxu0 0.0
  %518 = vmatprep.subr.mxu0 0.0
  %519 = vmatpush1.xpose.msra.mxu0 0.0
  %520 = vmatprep.subr.mxu0 0.0
  %521 = vmatpush1.xpose.msra.mxu0 0.0
  %522 = vmatprep.subr.mxu0 0.0
  %523 = vmatpush1.xpose.msra.mxu0 0.0
  %524 = vmatprep.subr.mxu0 0.0
  %525 = vmatpush1.xpose.msra.mxu0 0.0
  %526 = vmatprep.subr.mxu0 0.0
  %527 = vmatpush1.xpose.msra.mxu0 0.0
  %528 = vmatprep.mubr.f32.mxu0 0.0
  %529 = vmatmul.mubr.f32.gmra.mrb[0].mxu0 %v414
  %v530 = vpop.f32.mrb[0].mxu0
  %v531 = vadd.f32 0.0, %v530
  %v532 = vpop.f32.mrb[0].mxu0
  %533 = vdwg.mxu0
  %v534 = vadd.f32 %v394, %v531
  %v535 = vld [vmem:[#allocation2] sm:$0x1]
  %537 = vset.pattern.permute.xlu0 0
  %538 = vperm.xlu0 %537, %v535
  %v539 = vpop.permute.xlu0 %538
  %v541 = vlaneseq
  %v542 = vshrl.u32 %v541, 7
  %v543 = vsub.s32 0, %v542
  %v544 = vrot.slane %v539, %v543
  %v545 = vadd.f32 %v534, %v544
  %546 = vst [vmem:[%s9] sm:$0x1] %v545
  // Predicated region
  $region38: #{l_mlp_forward.1} parent=0 // pred_check
    _
  $region39: #{l_mlp_forward.1} parent=0 // pred_check_branch
    %548 = sbr.rel (0) target = $region41
  $region40: #{l_mlp_forward.1} parent=0 // pred_region
    _
  $region41: #{l_mlp_forward.1} parent=0 // pred_fallthru
    _
  // Predicated region
  $region42: #{l_mlp_forward.1} parent=0 // pred_check
    _
  $region43: #{l_mlp_forward.1} parent=0 // pred_check_branch
    %550 = sbr.rel (0) target = $region45
  $region44: #{l_mlp_forward.1} parent=0 // pred_region
    _
  $region45: #{l_mlp_forward.1} parent=0 // pred_fallthru
    _

</llo_original>
